<compile_context>
chip_gen: v6e
topology: v6e:2x2x1
jax: 0.10.0
libtpu: 0.0.40
codegen_flags: <defaults>
</compile_context>

<pallas_src>
import functools

import jax
import jax.numpy as jnp
import numpy as np
from jax.experimental import pallas as pl
from jax.experimental.pallas import tpu as pltpu


# ---------------------------------------------------------------------------
# Tile-size helpers (VMEM-budget aware; v7x has only 64 MiB physical VMEM).
# ---------------------------------------------------------------------------
_VMEM_LIMIT_BYTES = 32 * 1024 * 1024   # scoped limit we request (safe on v5e/v6e/v7x)
_VMEM_TILE_BUDGET = 20 * 1024 * 1024   # what tiles are sized against (headroom)


def _largest_divisor_leq(n, cap):
    cap = max(1, min(cap, n))
    for t in range(cap, 0, -1):
        if n % t == 0:
            return t
    return 1


def _pick_row_tile(M, K, N, target=1024):
    """Largest multiple-of-8 divisor of M that fits the VMEM budget (<= target),
    preferring >= 2 grid steps so both v7x TensorCores are busy."""
    itemsize = 4
    fixed = 2 * itemsize * (K * N + N)        # resident weight + bias (double-buffered)
    per_row = 2 * itemsize * (K + N)          # x-row + out-row, double-buffered
    cap = max(8, (_VMEM_TILE_BUDGET - fixed) // max(per_row, 1))
    cap = min(cap, target, M)
    if M >= 16:
        cap = min(cap, M // 2)
    for t in range((cap // 8) * 8, 0, -8):
        if M % t == 0:
            return t
    return M                                   # full-M block is always layout-legal


def _pick_window_tile(BW, Hn, L, D):
    itemsize = 4
    per_win = itemsize * Hn * (2 * 4 * L * D + 2 * L * L)
    cap = max(1, _VMEM_TILE_BUDGET // max(per_win, 1))
    if BW >= 2:
        cap = min(cap, max(1, BW // 2))        # >= 2 grid steps (megacore / v7x 2 TCs)
    return _largest_divisor_leq(BW, cap)


# ---------------------------------------------------------------------------
# Kernel 1: row-tiled matmul + bias (both 1x1 convs).
# ---------------------------------------------------------------------------
def _matmul_bias_kernel(x_ref, w_ref, b_ref, o_ref):
    acc = jnp.dot(x_ref[...], w_ref[...], preferred_element_type=jnp.float32)
    o_ref[...] = (acc + b_ref[...]).astype(o_ref.dtype)


def matmul_bias(x_mat, w_mat, bias=None):
    """x_mat: (M, K), w_mat: (K, N), bias: (N,) or None -> (M, N)."""
    M, K = x_mat.shape
    K2, N = w_mat.shape
    assert K == K2

    # Pad output channels to a 128-lane multiple: unmasked stores, full MXU width.
    n_pad = (-N) % 128
    Np = N + n_pad
    if n_pad:
        w_mat = jnp.pad(w_mat, ((0, 0), (0, n_pad)))
    if bias is None:
        bias_row = jnp.zeros((1, Np), dtype=jnp.float32)
    else:
        bias_row = jnp.pad(bias.reshape(1, N).astype(jnp.float32), ((0, 0), (0, n_pad)))

    tm = _pick_row_tile(M, K, Np)
    grid = (M // tm,)

    out = pl.pallas_call(
        _matmul_bias_kernel,
        out_shape=jax.ShapeDtypeStruct((M, Np), x_mat.dtype),
        grid_spec=pltpu.PrefetchScalarGridSpec(
            num_scalar_prefetch=0,
            grid=grid,
            in_specs=[
                pl.BlockSpec((tm, K), lambda i: (i, 0)),
                pl.BlockSpec((K, Np), lambda i: (0, 0)),
                pl.BlockSpec((1, Np), lambda i: (0, 0)),
            ],
            out_specs=pl.BlockSpec((tm, Np), lambda i: (i, 0)),
        ),
        compiler_params=pltpu.CompilerParams(
            dimension_semantics=("parallel",),
            vmem_limit_bytes=_VMEM_LIMIT_BYTES,
        ),
    )(x_mat, w_mat, bias_row)

    return out[:, :N] if n_pad else out


# ---------------------------------------------------------------------------
# Kernel 2: windowed multi-head attention (a tile of windows per grid step).
# ---------------------------------------------------------------------------
def _window_attn_kernel(q_ref, k_ref, v_ref, b_ref, o_ref, *, scale):
    TW, Hn, L, D = q_ref.shape
    q = q_ref[...].reshape(TW * Hn, L, D)
    k = k_ref[...].reshape(TW * Hn, L, D)
    v = v_ref[...].reshape(TW * Hn, L, D)

    dots = jnp.einsum("bqd,bkd->bqk", q, k, preferred_element_type=jnp.float32)
    dots = dots.reshape(TW, Hn, L, L) * scale + b_ref[...][None]   # (+ rel-pos bias)

    dots = dots - jnp.max(dots, axis=-1, keepdims=True)            # stable softmax
    p = jnp.exp(dots)
    p = p / jnp.sum(p, axis=-1, keepdims=True)

    p = p.reshape(TW * Hn, L, L).astype(v.dtype)
    out = jnp.einsum("bqk,bkd->bqd", p, v, preferred_element_type=jnp.float32)
    o_ref[...] = out.reshape(TW, Hn, L, D).astype(o_ref.dtype)


def window_attention(q, k, v, bias, *, scale):
    """q,k,v: (BW, heads, L, D); bias: (heads, L, L) -> (BW, heads, L, D)."""
    BW, Hn, L, D = q.shape
    tw = _pick_window_tile(BW, Hn, L, D)
    grid = (BW // tw,)
    kernel = functools.partial(_window_attn_kernel, scale=scale)

    return pl.pallas_call(
        kernel,
        out_shape=jax.ShapeDtypeStruct((BW, Hn, L, D), q.dtype),
        grid_spec=pltpu.PrefetchScalarGridSpec(
            num_scalar_prefetch=0,
            grid=grid,
            in_specs=[
                pl.BlockSpec((tw, Hn, L, D), lambda i: (i, 0, 0, 0)),
                pl.BlockSpec((tw, Hn, L, D), lambda i: (i, 0, 0, 0)),
                pl.BlockSpec((tw, Hn, L, D), lambda i: (i, 0, 0, 0)),
                pl.BlockSpec((Hn, L, L), lambda i: (0, 0, 0)),
            ],
            out_specs=pl.BlockSpec((tw, Hn, L, D), lambda i: (i, 0, 0, 0)),
        ),
        compiler_params=pltpu.CompilerParams(
            dimension_semantics=("parallel",),
            vmem_limit_bytes=_VMEM_LIMIT_BYTES,
        ),
    )(q, k, v, bias)


# ---------------------------------------------------------------------------
# Relative position bias (host-side table indexing, same as the PyTorch buffer).
# ---------------------------------------------------------------------------
def _relative_position_index(ws):
    coords = np.stack(np.meshgrid(np.arange(ws), np.arange(ws), indexing="ij"))
    coords_flat = coords.reshape(2, -1)
    rel = coords_flat[:, :, None] - coords_flat[:, None, :]
    rel = rel.transpose(1, 2, 0).copy()
    rel[:, :, 0] += ws - 1
    rel[:, :, 1] += ws - 1
    rel[:, :, 0] *= 2 * ws - 1
    return rel.sum(-1)                                              # (L, L) int


def _relative_position_bias(table, ws):
    L = ws * ws
    idx = jnp.asarray(_relative_position_index(ws).reshape(-1))
    bias = table[idx].reshape(L, L, -1)
    return jnp.transpose(bias, (2, 0, 1)).astype(jnp.float32)       # (heads, L, L)


# ---------------------------------------------------------------------------
# Shuffle_MSA forward (Pallas path).
# ---------------------------------------------------------------------------
def shuffle_msa_forward(x, w_qkv, w_proj, b_proj, *, num_heads, window_size,
                        shuffle=False, qk_scale=None,
                        relative_pos_embedding=False, rel_pos_table=None):
    B, C, H, W = x.shape
    ws = window_size
    # The original only defines `qkv` inside the padding branch (a latent bug);
    # we pad when needed and compute qkv unconditionally (the intended behaviour).
    if H % ws != 0 or W % ws != 0:
        pad_h = (ws - H % ws) % ws
        pad_w = (ws - W % ws) % ws
        x = jnp.pad(x, ((0, 0), (0, 0), (0, pad_h), (0, pad_w)))
        B, C, H, W = x.shape

    head_dim = C // num_heads
    scale = float(qk_scale) if qk_scale is not None else head_dim ** (-0.5)
    hh, ww = H // ws, W // ws
    L = ws * ws

    # ---- to_qkv: 1x1 conv (bias=False) as a lane-dense channel matmul -------
    x_flat = jnp.transpose(x, (0, 2, 3, 1)).reshape(B * H * W, C)   # channel-last
    w_qkv_mat = jnp.transpose(w_qkv.reshape(3 * C, C))              # (C, 3C)
    qkv = matmul_bias(x_flat, w_qkv_mat, None)                      # (M, 3C)

    # ---- window partition (layout glue) -------------------------------------
    qkv = qkv.reshape(B, H, W, 3, num_heads, head_dim)
    if shuffle:   # 'b (qkv h d) (ws1 hh) (ws2 ww) -> qkv (b hh ww) h (ws1 ws2) d'
        t = qkv.reshape(B, ws, hh, ws, ww, 3, num_heads, head_dim)
        t = jnp.transpose(t, (5, 0, 2, 4, 6, 1, 3, 7))
    else:         # 'b (qkv h d) (hh ws1) (ww ws2) -> qkv (b hh ww) h (ws1 ws2) d'
        t = qkv.reshape(B, hh, ws, ww, ws, 3, num_heads, head_dim)
        t = jnp.transpose(t, (5, 0, 1, 3, 6, 2, 4, 7))
    t = t.reshape(3, B * hh * ww, num_heads, L, head_dim)
    q, k, v = t[0], t[1], t[2]

    if relative_pos_embedding:
        bias = _relative_position_bias(rel_pos_table, ws)
    else:
        bias = jnp.zeros((num_heads, L, L), dtype=jnp.float32)

    out = window_attention(q, k, v, bias, scale=scale)              # (BW, h, L, d)

    # ---- window merge -> channel-last (lane-dense for the proj matmul) ------
    out = out.reshape(B, hh, ww, num_heads, ws, ws, head_dim)
    if shuffle:
        y = jnp.transpose(out, (0, 4, 1, 5, 2, 3, 6))               # b ws1 hh ws2 ww h d
    else:
        y = jnp.transpose(out, (0, 1, 4, 2, 5, 3, 6))               # b hh ws1 ww ws2 h d
    y = y.reshape(B * H * W, C)

    # ---- proj: 1x1 conv with bias -------------------------------------------
    w_proj_mat = jnp.transpose(w_proj.reshape(C, C))                # (C, C)
    y = matmul_bias(y, w_proj_mat, b_proj)                          # (M, C)

    # attn_drop / proj_drop: p = 0.0 -> identity.
    return jnp.transpose(y.reshape(B, H, W, C), (0, 3, 1, 2))       # NCHW


# ---------------------------------------------------------------------------
# Pure-JAX reference (mirrors the PyTorch forward exactly).
# ---------------------------------------------------------------------------
def shuffle_msa_reference(x, w_qkv, w_proj, b_proj, *, num_heads, window_size,
                          shuffle=False, qk_scale=None,
                          relative_pos_embedding=False, rel_pos_table=None):
    B, C, H, W = x.shape
    ws = window_size
    if H % ws != 0 or W % ws != 0:
        pad_h = (ws - H % ws) % ws
        pad_w = (ws - W % ws) % ws
        x = jnp.pad(x, ((0, 0), (0, 0), (0, pad_h), (0, pad_w)))
        B, C, H, W = x.shape
    d = C // num_heads
    scale = float(qk_scale) if qk_scale is not None else d ** (-0.5)
    hh, ww = H // ws, W // ws
    L = ws * ws

    qkv = jax.lax.conv_general_dilated(
        x, w_qkv, (1, 1), "VALID", dimension_numbers=("NCHW", "OIHW", "NCHW"))
    if shuffle:
        t = qkv.reshape(B, 3, num_heads, d, ws, hh, ws, ww)
        t = jnp.transpose(t, (1, 0, 5, 7, 2, 4, 6, 3))
    else:
        t = qkv.reshape(B, 3, num_heads, d, hh, ws, ww, ws)
        t = jnp.transpose(t, (1, 0, 4, 6, 2, 5, 7, 3))
    t = t.reshape(3, B * hh * ww, num_heads, L, d)
    q, k, v = t[0], t[1], t[2]

    dots = jnp.einsum("bhqd,bhkd->bhqk", q, k) * scale
    if relative_pos_embedding:
        dots = dots + _relative_position_bias(rel_pos_table, ws)[None]
    attn = jax.nn.softmax(dots, axis=-1)
    out = jnp.einsum("bhqk,bhkd->bhqd", attn, v)

    out = out.reshape(B, hh, ww, num_heads, ws, ws, d)
    if shuffle:
        y = jnp.transpose(out, (0, 3, 6, 4, 1, 5, 2)).reshape(B, C, H, W)
    else:
        y = jnp.transpose(out, (0, 3, 6, 1, 4, 2, 5)).reshape(B, C, H, W)
    y = jax.lax.conv_general_dilated(
        y, w_proj, (1, 1), "VALID", dimension_numbers=("NCHW", "OIHW", "NCHW"))
    return y + b_proj[None, :, None, None]


if __name__ == "__main__":
    key = jax.random.PRNGKey(0)
    k_x, k_qkv, k_proj, k_b, k_tab = jax.random.split(key, 5)

    B, C, H, W = 2, 32, 16, 16
    num_heads = 4
    ws = 4
    shuffle = False
    rel_pos = True

    x = jax.random.normal(k_x, (B, C, H, W), dtype=jnp.float32)
    w_qkv = jax.random.normal(k_qkv, (3 * C, C, 1, 1), dtype=jnp.float32) * (C ** -0.5)
    w_proj = jax.random.normal(k_proj, (C, C, 1, 1), dtype=jnp.float32) * (C ** -0.5)
    b_proj = 0.02 * jax.random.normal(k_b, (C,), dtype=jnp.float32)
    n_rel = (2 * ws - 1) * (2 * ws - 1)
    rel_table = 0.02 * jax.random.truncated_normal(
        k_tab, -2.0, 2.0, (n_rel, num_heads), dtype=jnp.float32)

    y = shuffle_msa_forward(
        x, w_qkv, w_proj, b_proj,
        num_heads=num_heads, window_size=ws, shuffle=shuffle,
        relative_pos_embedding=rel_pos, rel_pos_table=rel_table)
    y = jax.block_until_ready(y)
    assert y.shape == (B, C, H, W)

    y_ref = shuffle_msa_reference(
        x, w_qkv, w_proj, b_proj,
        num_heads=num_heads, window_size=ws, shuffle=shuffle,
        relative_pos_embedding=rel_pos, rel_pos_table=rel_table)
    y_ref = jax.block_until_ready(y_ref)

    assert jnp.allclose(y, y_ref, atol=1e-4, rtol=1e-4), float(jnp.max(jnp.abs(y - y_ref)))

    print("KERNEL_OK")
</pallas_src>

<mosaic_0001>
module attributes {stable_mosaic.version = 11 : i64} {
  func.func @_matmul_bias_kernel(%arg0: i32, %arg1: memref<256x32xf32, #tpu.memory_space<vmem>>, %arg2: memref<32x128xf32, #tpu.memory_space<vmem>>, %arg3: memref<1x128xf32, #tpu.memory_space<vmem>>, %arg4: memref<256x128xf32, #tpu.memory_space<vmem>>) attributes {dimension_semantics = [#tpu.dimension_semantics<parallel>], iteration_bounds = array<i64: 2>, scalar_prefetch = 0 : i64, scratch_operands = 0 : i64, tpu.core_type = #tpu.core_type<tc>, window_params = [{transform_indices = @transform_0, window_bounds = array<i64: 256, 32>}, {pipeline_mode = #tpu.pipeline_mode<synchronous>, transform_indices = @transform_1, window_bounds = array<i64: 32, 128>}, {pipeline_mode = #tpu.pipeline_mode<synchronous>, transform_indices = @transform_2, window_bounds = array<i64: 1, 128>}, {transform_indices = @transform_3, window_bounds = array<i64: 256, 128>}]} {
    %c0 = arith.constant 0 : index
    %c0_0 = arith.constant 0 : index
    %0 = vector.load %arg1[%c0, %c0_0] : memref<256x32xf32, #tpu.memory_space<vmem>>, vector<256x32xf32>
    %c0_1 = arith.constant 0 : index
    %c0_2 = arith.constant 0 : index
    %1 = vector.load %arg2[%c0_1, %c0_2] : memref<32x128xf32, #tpu.memory_space<vmem>>, vector<32x128xf32>
    %cst = arith.constant dense<0.000000e+00> : vector<256x128xf32>
    %2 = tpu.matmul %0, %1, %cst {dimension_numbers = #tpu.dot_dimension_numbers<[1], [0], [0], [1], [0, 0, 1, 1], [], []>} : vector<256x32xf32>, vector<32x128xf32>, vector<256x128xf32> -> vector<256x128xf32>
    %c0_3 = arith.constant 0 : index
    %c0_4 = arith.constant 0 : index
    %3 = vector.load %arg3[%c0_3, %c0_4] : memref<1x128xf32, #tpu.memory_space<vmem>>, vector<1x128xf32>
    %4 = vector.broadcast %3 : vector<1x128xf32> to vector<256x128xf32>
    %5 = arith.addf %2, %4 : vector<256x128xf32>
    %c0_5 = arith.constant 0 : index
    %c0_6 = arith.constant 0 : index
    %6 = vector.load %arg4[%c0_5, %c0_6] : memref<256x128xf32, #tpu.memory_space<vmem>>, vector<256x128xf32>
    tpu.vector_store %arg4[%c0_5, %c0_6], %5 {strides = array<i32>} : memref<256x128xf32, #tpu.memory_space<vmem>>, vector<256x128xf32>,
    return
  }
  func.func @transform_0(%arg0: i32) -> (i32, i32) {
    %c0_i32 = arith.constant 0 : i32
    %c0_i32_0 = arith.constant 0 : i32
    return %arg0, %c0_i32 : i32, i32
  }
  func.func @transform_1(%arg0: i32) -> (i32, i32) {
    %c0_i32 = arith.constant 0 : i32
    %c0_i32_0 = arith.constant 0 : i32
    %c0_i32_1 = arith.constant 0 : i32
    return %c0_i32, %c0_i32_0 : i32, i32
  }
  func.func @transform_2(%arg0: i32) -> (i32, i32) {
    %c0_i32 = arith.constant 0 : i32
    %c0_i32_0 = arith.constant 0 : i32
    %c0_i32_1 = arith.constant 0 : i32
    return %c0_i32, %c0_i32_0 : i32, i32
  }
  func.func @transform_3(%arg0: i32) -> (i32, i32) {
    %c0_i32 = arith.constant 0 : i32
    %c0_i32_0 = arith.constant 0 : i32
    return %arg0, %c0_i32 : i32, i32
  }
}

</mosaic_0001>

<llo_original>
// kernel: tpu_custom_call.1
$region0: #{tpu_custom_call.1}
  #allocation0 [shape = 'u32[]', space=smem, size = 0x4, offset = 0x4, fixed_abs, tag = 'smem constant byte address 0x4 - core index']
  #allocation1 [shape = 'u32[144,128]{1,0:T(1,128)}', space=vmem, size = 0x12000, scoped, tag = 'internal scratch']
  %s0 = inlined_call_operand.vmem [shape: f32[512,32], index: 0, kind: input, shape index: {}]
  %s1 = inlined_call_operand.vmem [shape: f32[32,128], index: 1, kind: input, shape index: {}]
  %s2 = inlined_call_operand.vmem [shape: f32[1,128], index: 2, kind: input, shape index: {}]
  %s3 = inlined_call_operand.hbm [shape: f32[512,128], index: 3, kind: output, shape index: {}]
  %s4 = sld [smem:[#allocation0]]
  $region45: #{tpu_custom_call.1} parent=0
    _
  %s6 = ssub.s32 1, %s4
  %s7 = scalar_select 0, %s6, %s4
  $region1: #{tpu_custom_call.1} parent=0
    #allocation2 [shape = 'u8[262144]{0}', space=vmem, size = 0x40000, scoped, tag = 'output window, operand 0']
    #allocation3 [shape = 's32[2]{0}', space=sflag, size = 0x8, scoped, tag = 'scoped memory for tpu_custom_call.1']
    %8 = vsyncpa [#allocation3], 0
    %s9 = scalar_lea.sflag [#allocation3], 1
    %10 = vsyncpa %s9, 0
    loop: start=0, step=1, limit=4
    $region2: #{tpu_custom_call.1} parent=1 // loop_pre_header
      _
    $region3: #{tpu_custom_call.1} parent=1 // loop_header
      %s12 = sphi 0, %s16
      %p13 = scmp.ge.s32.totalorder %s12, 4
      %s22 = sphi 0, %s24
      %s25 = sphi 0, %s22
      %s26 = sphi 0, %s25
      %s42 = sphi 0, %s26
      %s46 = sphi 0, %s46
      %s48 = sphi 0, %s46
      %s49 = sphi 0, %s48
      %s63 = sphi 0, %s49
      %s67 = sphi 0, %s67
      %s69 = sphi 0, %s67
      %s70 = sphi 0, %s69
      %s84 = sphi 0, %s70
      %s90 = sphi 0, %s92
      %s93 = sphi 0, %s90
      %s94 = sphi 0, %s93
      %s110 = sphi 0, %s94
    $region4: #{tpu_custom_call.1} parent=1 // loop_header_branch
      %15 = sbr.rel (%p13) target = $region8
    $region5: #{tpu_custom_call.1} parent=1 // loop_body
      %s17 = ssub.s32 %s12, 1
      %s18 = ssub.s32 %s12, 2
      %s19 = sadd.s32 %s12, 1
      %s20 = ssub.s32 %s12, %s19
      %p21 = scmp.eq.s32.totalorder %s20, 0
      %s23 = sadd.s32 %s22, 1
      %s24 = scalar_select %p21, %s22, %s23
      %p27 = pneg %p21
      %p28 = scmp.eq.s32.totalorder %s12, 1
      %p29 = por %p27, %p28
      %p30 = scmp.ne.s32.totalorder %s22, %s25
      %p31 = scmp.eq.s32.totalorder %s12, 0
      %p32 = por %p30, %p31
      %p33 = scmp.ne.s32.totalorder %s22, %s25
      %p34 = scmp.eq.s32.totalorder %s17, 1
      %p35 = por %p33, %p34
      %p36 = scmp.ne.s32.totalorder %s25, %s26
      %p37 = scmp.eq.s32.totalorder %s17, 0
      %p38 = por %p36, %p37
      %p39 = scmp.ne.s32.totalorder %s25, %s26
      %p40 = scmp.eq.s32.totalorder %s18, 1
      %p41 = por %p39, %p40
      %p43 = scmp.ne.s32.totalorder %s26, %s42
      %p44 = scmp.eq.s32.totalorder %s18, 0
      %p45 = por %p43, %p44
      %s47 = sadd.s32 %s46, 1
      %p50 = scmp.eq.s32.totalorder %s12, 1
      %p51 = scmp.ne.s32.totalorder %s46, %s48
      %p52 = scmp.eq.s32.totalorder %s12, 0
      %p53 = por %p51, %p52
      %p54 = scmp.ne.s32.totalorder %s46, %s48
      %p55 = scmp.eq.s32.totalorder %s17, 1
      %p56 = por %p54, %p55
      %p57 = scmp.ne.s32.totalorder %s48, %s49
      %p58 = scmp.eq.s32.totalorder %s17, 0
      %p59 = por %p57, %p58
      %p60 = scmp.ne.s32.totalorder %s48, %s49
      %p61 = scmp.eq.s32.totalorder %s18, 1
      %p62 = por %p60, %p61
      %p64 = scmp.ne.s32.totalorder %s49, %s63
      %p65 = scmp.eq.s32.totalorder %s18, 0
      %p66 = por %p64, %p65
      %s68 = sadd.s32 %s67, 1
      %p71 = scmp.eq.s32.totalorder %s12, 1
      %p72 = scmp.ne.s32.totalorder %s67, %s69
      %p73 = scmp.eq.s32.totalorder %s12, 0
      %p74 = por %p72, %p73
      %p75 = scmp.ne.s32.totalorder %s67, %s69
      %p76 = scmp.eq.s32.totalorder %s17, 1
      %p77 = por %p75, %p76
      %p78 = scmp.ne.s32.totalorder %s69, %s70
      %p79 = scmp.eq.s32.totalorder %s17, 0
      %p80 = por %p78, %p79
      %p81 = scmp.ne.s32.totalorder %s69, %s70
      %p82 = scmp.eq.s32.totalorder %s18, 1
      %p83 = por %p81, %p82
      %p85 = scmp.ne.s32.totalorder %s70, %s84
      %p86 = scmp.eq.s32.totalorder %s18, 0
      %p87 = por %p85, %p86
      %s88 = ssub.s32 %s12, %s19
      %p89 = scmp.eq.s32.totalorder %s88, 0
      %s91 = sadd.s32 %s90, 1
      %s92 = scalar_select %p89, %s90, %s91
      %p95 = pneg %p89
      %p96 = scmp.eq.s32.totalorder %s12, 1
      %p97 = por %p95, %p96
      %p98 = scmp.ne.s32.totalorder %s90, %s93
      %p99 = scmp.eq.s32.totalorder %s12, 0
      %p100 = por %p98, %p99
      %p101 = scmp.ne.s32.totalorder %s90, %s93
      %p102 = scmp.eq.s32.totalorder %s17, 1
      %p103 = por %p101, %p102
      %p104 = scmp.ne.s32.totalorder %s93, %s94
      %p105 = scmp.eq.s32.totalorder %s17, 0
      %p106 = por %p104, %p105
      %p107 = scmp.ne.s32.totalorder %s93, %s94
      %p108 = scmp.eq.s32.totalorder %s18, 1
      %p109 = por %p107, %p108
      %p111 = scmp.ne.s32.totalorder %s94, %s110
      %p112 = scmp.eq.s32.totalorder %s18, 0
      %p113 = por %p111, %p112
      %p114 = scmp.le.s32.totalorder 1, %s12
      %p115 = scmp.lt.s32.totalorder %s12, 3
      %p116 = pnand %p114, %p115
      %p117 = pneg %p116
      // Predicated region
      $region9: #{tpu_custom_call.1} parent=5 // pred_check
        _
      $region10: #{tpu_custom_call.1} parent=5 // pred_check_branch
        %119 = sbr.rel (%p116) target = $region12
      $region11: #{tpu_custom_call.1} parent=5 // pred_region
        %s120 = ssub.s32 %s12, 1
        // Predicated region
        $region13: #{tpu_custom_call.1} parent=11 // pred_check
          %p121 = pneg %p59
        $region14: #{tpu_custom_call.1} parent=11 // pred_check_branch
          %123 = sbr.rel (%p121) target = $region16
        $region15: #{tpu_custom_call.1} parent=11 // pred_region
          _
        $region16: #{tpu_custom_call.1} parent=11 // pred_fallthru
          _
        // Predicated region
        $region17: #{tpu_custom_call.1} parent=11 // pred_check
          %p124 = pneg %p80
        $region18: #{tpu_custom_call.1} parent=11 // pred_check_branch
          %126 = sbr.rel (%p124) target = $region20
        $region19: #{tpu_custom_call.1} parent=11 // pred_region
          _
        $region20: #{tpu_custom_call.1} parent=11 // pred_fallthru
          _
      $region12: #{tpu_custom_call.1} parent=5 // pred_fallthru
        _
      %p127 = scmp.lt.s32.totalorder %s12, 2
      // Predicated region
      $region21: #{tpu_custom_call.1} parent=5 // pred_check
        %p128 = pneg %p127
      $region22: #{tpu_custom_call.1} parent=5 // pred_check_branch
        %130 = sbr.rel (%p128) target = $region24
      $region23: #{tpu_custom_call.1} parent=5 // pred_region
        // Predicated region
        $region25: #{tpu_custom_call.1} parent=23 // pred_check
          %p131 = pneg %p32
        $region26: #{tpu_custom_call.1} parent=23 // pred_check_branch
          %133 = sbr.rel (%p131) target = $region28
        $region27: #{tpu_custom_call.1} parent=23 // pred_region
          %s134 = smul.u32 32, %s12
          %p135 = scmp.lt.s32.totalorder %s134, 63
          %s136 = scalar_select %p135, %s134, 63
          %s137 = smul.addr %s136, 8
          %s138 = scalar_lea.vmem %s0, %s137
          %s139 = smul.u32 32, %s12
        $region28: #{tpu_custom_call.1} parent=23 // pred_fallthru
          _
      $region24: #{tpu_custom_call.1} parent=5 // pred_fallthru
        _
      %p140 = scmp.le.s32.totalorder 1, %s12
      %p141 = scmp.lt.s32.totalorder %s12, 3
      %p142 = pnand %p140, %p141
      %p143 = pneg %p142
      // Predicated region
      $region29: #{tpu_custom_call.1} parent=5 // pred_check
        _
      $region30: #{tpu_custom_call.1} parent=5 // pred_check_branch
        %145 = sbr.rel (%p142) target = $region32
      $region31: #{tpu_custom_call.1} parent=5 // pred_region
        %s146 = ssub.s32 %s12, 1
        %s147 = smul.u32 32, %s17
        %p148 = scmp.lt.s32.totalorder %s147, 63
        %s149 = scalar_select %p148, %s147, 63
        %s150 = smul.addr %s149, 8
        %s151 = scalar_lea.vmem %s0, %s150
        %p152 = pneg %p38
        %p153 = pneg %p35
        %p154 = pneg %p59
        %p155 = pneg %p56
        %p156 = pneg %p80
        %p157 = pneg %p77
        %p158 = pneg %p106
        %p159 = pneg %p103
        %s160 = sand.u32 %s93, 1
        %s161 = scalar_lea.sflag [#allocation3], %s160
        %s162 = sand.u32 %s93, 1
        %s163 = smul.addr %s162, 256
        %s164 = scalar_lea.vmem [#allocation2], %s163
        %s165 = smul.u32 32, %s17
        %p166 = scmp.lt.s32.totalorder %s165, 63
        %s167 = scalar_select %p166, %s165, 63
        %s168 = smul.addr %s167, 8
        %s169 = scalar_lea.vmem %s0, %s168
        %s170 = smul.u32 32, %s17
        %s171 = smul.u32 32, %s17
        %v172 = vld [vmem:[%s169] sm:$0xff]
        %v173 = vld [vmem:[%s169 + $0x8] sm:$0xff]
        %v174 = vld [vmem:[%s169 + $0x10] sm:$0xff]
        %v175 = vld [vmem:[%s169 + $0x18] sm:$0xff]
        %v176 = vld [vmem:[%s169 + $0x20] sm:$0xff]
        %v177 = vld [vmem:[%s169 + $0x28] sm:$0xff]
        %v178 = vld [vmem:[%s169 + $0x30] sm:$0xff]
        %v179 = vld [vmem:[%s169 + $0x38] sm:$0xff]
        %v180 = vld [vmem:[%s169 + $0x40] sm:$0xff]
        %v181 = vld [vmem:[%s169 + $0x48] sm:$0xff]
        %v182 = vld [vmem:[%s169 + $0x50] sm:$0xff]
        %v183 = vld [vmem:[%s169 + $0x58] sm:$0xff]
        %v184 = vld [vmem:[%s169 + $0x60] sm:$0xff]
        %v185 = vld [vmem:[%s169 + $0x68] sm:$0xff]
        %v186 = vld [vmem:[%s169 + $0x70] sm:$0xff]
        %v187 = vld [vmem:[%s169 + $0x78] sm:$0xff]
        %v188 = vld [vmem:[%s169 + $0x80] sm:$0xff]
        %v189 = vld [vmem:[%s169 + $0x88] sm:$0xff]
        %v190 = vld [vmem:[%s169 + $0x90] sm:$0xff]
        %v191 = vld [vmem:[%s169 + $0x98] sm:$0xff]
        %v192 = vld [vmem:[%s169 + $0xa0] sm:$0xff]
        %v193 = vld [vmem:[%s169 + $0xa8] sm:$0xff]
        %v194 = vld [vmem:[%s169 + $0xb0] sm:$0xff]
        %v195 = vld [vmem:[%s169 + $0xb8] sm:$0xff]
        %v196 = vld [vmem:[%s169 + $0xc0] sm:$0xff]
        %v197 = vld [vmem:[%s169 + $0xc8] sm:$0xff]
        %v198 = vld [vmem:[%s169 + $0xd0] sm:$0xff]
        %v199 = vld [vmem:[%s169 + $0xd8] sm:$0xff]
        %v200 = vld [vmem:[%s169 + $0xe0] sm:$0xff]
        %v201 = vld [vmem:[%s169 + $0xe8] sm:$0xff]
        %v202 = vld [vmem:[%s169 + $0xf0] sm:$0xff]
        %v203 = vld [vmem:[%s169 + $0xf8] sm:$0xff]
        %v204 = vld [vmem:[%s1] sm:$0xff]
        %v205 = vld [vmem:[%s1 + $0x8] sm:$0xff]
        %v206 = vld [vmem:[%s1 + $0x10] sm:$0xff]
        %v207 = vld [vmem:[%s1 + $0x18] sm:$0xff]
        %v208 = vld [vmem:[%s2] sm:$0x1]
        %v210 = vlaneseq
        %v211 = vshrl.u32 %v210, 7
        %v212 = vsub.s32 0, %v211
        %v213 = vrot.slane %v208, %v212
        %vm215 = vcmask 261120
        %v217 = vsel %vm215, %v172, 0
        %v220 = vsel %vm215, %v173, 0
        %v223 = vsel %vm215, %v174, 0
        %v226 = vsel %vm215, %v175, 0
        %v229 = vsel %vm215, %v176, 0
        %v232 = vsel %vm215, %v177, 0
        %v235 = vsel %vm215, %v178, 0
        %v238 = vsel %vm215, %v179, 0
        %v241 = vsel %vm215, %v180, 0
        %v244 = vsel %vm215, %v181, 0
        %v247 = vsel %vm215, %v182, 0
        %v250 = vsel %vm215, %v183, 0
        %v253 = vsel %vm215, %v184, 0
        %v256 = vsel %vm215, %v185, 0
        %v259 = vsel %vm215, %v186, 0
        %v262 = vsel %vm215, %v187, 0
        %v265 = vsel %vm215, %v188, 0
        %v268 = vsel %vm215, %v189, 0
        %v271 = vsel %vm215, %v190, 0
        %v274 = vsel %vm215, %v191, 0
        %v277 = vsel %vm215, %v192, 0
        %v280 = vsel %vm215, %v193, 0
        %v283 = vsel %vm215, %v194, 0
        %v286 = vsel %vm215, %v195, 0
        %v289 = vsel %vm215, %v196, 0
        %v292 = vsel %vm215, %v197, 0
        %v295 = vsel %vm215, %v198, 0
        %v298 = vsel %vm215, %v199, 0
        %v301 = vsel %vm215, %v200, 0
        %v304 = vsel %vm215, %v201, 0
        %v307 = vsel %vm215, %v202, 0
        %v310 = vsel %vm215, %v203, 0
        %312 = vmatprep.subr.mxu0 0.0
        %313 = vmatpush1.msra.mxu0 0.0
        %314 = vmatprep.subr.mxu0 0.0
        %315 = vmatpush1.msra.mxu0 0.0
        %316 = vmatprep.subr.mxu0 0.0
        %317 = vmatpush1.msra.mxu0 0.0
        %318 = vmatprep.subr.mxu0 0.0
        %319 = vmatpush1.msra.mxu0 0.0
        %320 = vmatprep.subr.mxu0 0.0
        %321 = vmatpush1.msra.mxu0 0.0
        %322 = vmatprep.subr.mxu0 0.0
        %323 = vmatpush1.msra.mxu0 0.0
        %324 = vmatprep.subr.mxu0 0.0
        %325 = vmatpush1.msra.mxu0 0.0
        %326 = vmatprep.subr.mxu0 0.0
        %327 = vmatpush1.msra.mxu0 0.0
        %328 = vmatprep.subr.mxu0 0.0
        %329 = vmatpush1.msra.mxu0 0.0
        %330 = vmatprep.subr.mxu0 0.0
        %331 = vmatpush1.msra.mxu0 0.0
        %332 = vmatprep.subr.mxu0 0.0
        %333 = vmatpush1.msra.mxu0 0.0
        %334 = vmatprep.subr.mxu0 0.0
        %335 = vmatpush1.msra.mxu0 0.0
        %336 = vmatprep.subr.mxu0 0.0
        %337 = vmatpush1.msra.mxu0 %v207
        %338 = vmatprep.subr.mxu0 0.0
        %339 = vmatpush1.msra.mxu0 %v206
        %340 = vmatprep.subr.mxu0 0.0
        %341 = vmatpush1.msra.mxu0 %v205
        %342 = vmatprep.subr.mxu0 0.0
        %343 = vmatpush1.msra.mxu0 %v204
        %344 = vmatprep.subr.mxu0 0.0
        %345 = vmatpush2.msra.mxu0 0.0
        %346 = vmatprep.subr.mxu0 0.0
        %347 = vmatpush2.msra.mxu0 0.0
        %348 = vmatprep.subr.mxu0 0.0
        %349 = vmatpush2.msra.mxu0 0.0
        %350 = vmatprep.subr.mxu0 0.0
        %351 = vmatpush2.msra.mxu0 0.0
        %352 = vmatprep.subr.mxu0 0.0
        %353 = vmatpush2.msra.mxu0 0.0
        %354 = vmatprep.subr.mxu0 0.0
        %355 = vmatpush2.msra.mxu0 0.0
        %356 = vmatprep.subr.mxu0 0.0
        %357 = vmatpush2.msra.mxu0 0.0
        %358 = vmatprep.subr.mxu0 0.0
        %359 = vmatpush2.msra.mxu0 0.0
        %360 = vmatprep.subr.mxu0 0.0
        %361 = vmatpush2.msra.mxu0 0.0
        %362 = vmatprep.subr.mxu0 0.0
        %363 = vmatpush2.msra.mxu0 0.0
        %364 = vmatprep.subr.mxu0 0.0
        %365 = vmatpush2.msra.mxu0 0.0
        %366 = vmatprep.subr.mxu0 0.0
        %367 = vmatpush2.msra.mxu0 0.0
        %368 = vmatprep.subr.mxu0 0.0
        %369 = vmatpush2.msra.mxu0 0.0
        %370 = vmatprep.subr.mxu0 0.0
        %371 = vmatpush2.msra.mxu0 0.0
        %372 = vmatprep.subr.mxu0 0.0
        %373 = vmatpush2.msra.mxu0 0.0
        %374 = vmatprep.subr.mxu0 0.0
        %375 = vmatpush2.msra.mxu0 0.0
        %376 = vmatprep.mubr.f32.mxu0 0.0
        %377 = vmatmul.mubr.f32.gmra.mxu0 %v217
        %v378 = vpop.f32.mrf.mxu0
        %v379 = vadd.f32 %v213, %v378
        %v380 = vpop.f32.mrf.mxu0
        %381 = vmatprep.mubr.f32.mxu0 0.0
        %382 = vmatmul.mubr.f32.gmra.mxu0 %v220
        %v383 = vpop.f32.mrf.mxu0
        %v384 = vadd.f32 %v213, %v383
        %v385 = vpop.f32.mrf.mxu0
        %386 = vmatprep.mubr.f32.mxu0 0.0
        %387 = vmatmul.mubr.f32.gmra.mxu0 %v223
        %v388 = vpop.f32.mrf.mxu0
        %v389 = vadd.f32 %v213, %v388
        %v390 = vpop.f32.mrf.mxu0
        %391 = vmatprep.mubr.f32.mxu0 0.0
        %392 = vmatmul.mubr.f32.gmra.mxu0 %v226
        %v393 = vpop.f32.mrf.mxu0
        %v394 = vadd.f32 %v213, %v393
        %v395 = vpop.f32.mrf.mxu0
        %396 = vmatprep.mubr.f32.mxu0 0.0
        %397 = vmatmul.mubr.f32.gmra.mxu0 %v229
        %v398 = vpop.f32.mrf.mxu0
        %v399 = vadd.f32 %v213, %v398
        %v400 = vpop.f32.mrf.mxu0
        %401 = vmatprep.mubr.f32.mxu0 0.0
        %402 = vmatmul.mubr.f32.gmra.mxu0 %v232
        %v403 = vpop.f32.mrf.mxu0
        %v404 = vadd.f32 %v213, %v403
        %v405 = vpop.f32.mrf.mxu0
        %406 = vmatprep.mubr.f32.mxu0 0.0
        %407 = vmatmul.mubr.f32.gmra.mxu0 %v235
        %v408 = vpop.f32.mrf.mxu0
        %v409 = vadd.f32 %v213, %v408
        %v410 = vpop.f32.mrf.mxu0
        %411 = vmatprep.mubr.f32.mxu0 0.0
        %412 = vmatmul.mubr.f32.gmra.mxu0 %v238
        %v413 = vpop.f32.mrf.mxu0
        %v414 = vadd.f32 %v213, %v413
        %v415 = vpop.f32.mrf.mxu0
        %416 = vmatprep.mubr.f32.mxu0 0.0
        %417 = vmatmul.mubr.f32.gmra.mxu0 %v241
        %v418 = vpop.f32.mrf.mxu0
        %v419 = vadd.f32 %v213, %v418
        %v420 = vpop.f32.mrf.mxu0
        %421 = vmatprep.mubr.f32.mxu0 0.0
        %422 = vmatmul.mubr.f32.gmra.mxu0 %v244
        %v423 = vpop.f32.mrf.mxu0
        %v424 = vadd.f32 %v213, %v423
        %v425 = vpop.f32.mrf.mxu0
        %426 = vmatprep.mubr.f32.mxu0 0.0
        %427 = vmatmul.mubr.f32.gmra.mxu0 %v247
        %v428 = vpop.f32.mrf.mxu0
        %v429 = vadd.f32 %v213, %v428
        %v430 = vpop.f32.mrf.mxu0
        %431 = vmatprep.mubr.f32.mxu0 0.0
        %432 = vmatmul.mubr.f32.gmra.mxu0 %v250
        %v433 = vpop.f32.mrf.mxu0
        %v434 = vadd.f32 %v213, %v433
        %v435 = vpop.f32.mrf.mxu0
        %436 = vmatprep.mubr.f32.mxu0 0.0
        %437 = vmatmul.mubr.f32.gmra.mxu0 %v253
        %v438 = vpop.f32.mrf.mxu0
        %v439 = vadd.f32 %v213, %v438
        %v440 = vpop.f32.mrf.mxu0
        %441 = vmatprep.mubr.f32.mxu0 0.0
        %442 = vmatmul.mubr.f32.gmra.mxu0 %v256
        %v443 = vpop.f32.mrf.mxu0
        %v444 = vadd.f32 %v213, %v443
        %v445 = vpop.f32.mrf.mxu0
        %446 = vmatprep.mubr.f32.mxu0 0.0
        %447 = vmatmul.mubr.f32.gmra.mxu0 %v259
        %v448 = vpop.f32.mrf.mxu0
        %v449 = vadd.f32 %v213, %v448
        %v450 = vpop.f32.mrf.mxu0
        %451 = vmatprep.mubr.f32.mxu0 0.0
        %452 = vmatmul.mubr.f32.gmra.mxu0 %v262
        %v453 = vpop.f32.mrf.mxu0
        %v454 = vadd.f32 %v213, %v453
        %v455 = vpop.f32.mrf.mxu0
        %456 = vmatprep.mubr.f32.mxu0 0.0
        %457 = vmatmul.mubr.f32.gmra.mxu0 %v265
        %v458 = vpop.f32.mrf.mxu0
        %v459 = vadd.f32 %v213, %v458
        %v460 = vpop.f32.mrf.mxu0
        %461 = vmatprep.mubr.f32.mxu0 0.0
        %462 = vmatmul.mubr.f32.gmra.mxu0 %v268
        %v463 = vpop.f32.mrf.mxu0
        %v464 = vadd.f32 %v213, %v463
        %v465 = vpop.f32.mrf.mxu0
        %466 = vmatprep.mubr.f32.mxu0 0.0
        %467 = vmatmul.mubr.f32.gmra.mxu0 %v271
        %v468 = vpop.f32.mrf.mxu0
        %v469 = vadd.f32 %v213, %v468
        %v470 = vpop.f32.mrf.mxu0
        %471 = vmatprep.mubr.f32.mxu0 0.0
        %472 = vmatmul.mubr.f32.gmra.mxu0 %v274
        %v473 = vpop.f32.mrf.mxu0
        %v474 = vadd.f32 %v213, %v473
        %v475 = vpop.f32.mrf.mxu0
        %476 = vmatprep.mubr.f32.mxu0 0.0
        %477 = vmatmul.mubr.f32.gmra.mxu0 %v277
        %v478 = vpop.f32.mrf.mxu0
        %v479 = vadd.f32 %v213, %v478
        %v480 = vpop.f32.mrf.mxu0
        %481 = vmatprep.mubr.f32.mxu0 0.0
        %482 = vmatmul.mubr.f32.gmra.mxu0 %v280
        %v483 = vpop.f32.mrf.mxu0
        %v484 = vadd.f32 %v213, %v483
        %v485 = vpop.f32.mrf.mxu0
        %486 = vmatprep.mubr.f32.mxu0 0.0
        %487 = vmatmul.mubr.f32.gmra.mxu0 %v283
        %v488 = vpop.f32.mrf.mxu0
        %v489 = vadd.f32 %v213, %v488
        %v490 = vpop.f32.mrf.mxu0
        %491 = vmatprep.mubr.f32.mxu0 0.0
        %492 = vmatmul.mubr.f32.gmra.mxu0 %v286
        %v493 = vpop.f32.mrf.mxu0
        %v494 = vadd.f32 %v213, %v493
        %v495 = vpop.f32.mrf.mxu0
        %496 = vmatprep.mubr.f32.mxu0 0.0
        %497 = vmatmul.mubr.f32.gmra.mxu0 %v289
        %v498 = vpop.f32.mrf.mxu0
        %v499 = vadd.f32 %v213, %v498
        %v500 = vpop.f32.mrf.mxu0
        %501 = vmatprep.mubr.f32.mxu0 0.0
        %502 = vmatmul.mubr.f32.gmra.mxu0 %v292
        %v503 = vpop.f32.mrf.mxu0
        %v504 = vadd.f32 %v213, %v503
        %v505 = vpop.f32.mrf.mxu0
        %506 = vmatprep.mubr.f32.mxu0 0.0
        %507 = vmatmul.mubr.f32.gmra.mxu0 %v295
        %v508 = vpop.f32.mrf.mxu0
        %v509 = vadd.f32 %v213, %v508
        %v510 = vpop.f32.mrf.mxu0
        %511 = vmatprep.mubr.f32.mxu0 0.0
        %512 = vmatmul.mubr.f32.gmra.mxu0 %v298
        %v513 = vpop.f32.mrf.mxu0
        %v514 = vadd.f32 %v213, %v513
        %v515 = vpop.f32.mrf.mxu0
        %516 = vmatprep.mubr.f32.mxu0 0.0
        %517 = vmatmul.mubr.f32.gmra.mxu0 %v301
        %v518 = vpop.f32.mrf.mxu0
        %v519 = vadd.f32 %v213, %v518
        %v520 = vpop.f32.mrf.mxu0
        %521 = vmatprep.mubr.f32.mxu0 0.0
        %522 = vmatmul.mubr.f32.gmra.mxu0 %v304
        %v523 = vpop.f32.mrf.mxu0
        %v524 = vadd.f32 %v213, %v523
        %v525 = vpop.f32.mrf.mxu0
        %526 = vmatprep.mubr.f32.mxu0 0.0
        %527 = vmatmul.mubr.f32.gmra.mxu0 %v307
        %v528 = vpop.f32.mrf.mxu0
        %v529 = vadd.f32 %v213, %v528
        %v530 = vpop.f32.mrf.mxu0
        %531 = vmatprep.mubr.f32.mxu0 0.0
        %532 = vmatmul.mubr.f32.gmra.mxu0 %v310
        %v533 = vpop.f32.mrf.mxu0
        %v534 = vadd.f32 %v213, %v533
        %v535 = vpop.f32.mrf.mxu0
        %536 = vdwg.mxu0
        %537 = vst [vmem:[%s164] sm:$0xff] %v379
        %538 = vst [vmem:[%s164 + $0x8] sm:$0xff] %v384
        %539 = vst [vmem:[%s164 + $0x10] sm:$0xff] %v389
        %540 = vst [vmem:[%s164 + $0x18] sm:$0xff] %v394
        %541 = vst [vmem:[%s164 + $0x20] sm:$0xff] %v399
        %542 = vst [vmem:[%s164 + $0x28] sm:$0xff] %v404
        %543 = vst [vmem:[%s164 + $0x30] sm:$0xff] %v409
        %544 = vst [vmem:[%s164 + $0x38] sm:$0xff] %v414
        %545 = vst [vmem:[%s164 + $0x40] sm:$0xff] %v419
        %546 = vst [vmem:[%s164 + $0x48] sm:$0xff] %v424
        %547 = vst [vmem:[%s164 + $0x50] sm:$0xff] %v429
        %548 = vst [vmem:[%s164 + $0x58] sm:$0xff] %v434
        %549 = vst [vmem:[%s164 + $0x60] sm:$0xff] %v439
        %550 = vst [vmem:[%s164 + $0x68] sm:$0xff] %v444
        %551 = vst [vmem:[%s164 + $0x70] sm:$0xff] %v449
        %552 = vst [vmem:[%s164 + $0x78] sm:$0xff] %v454
        %553 = vst [vmem:[%s164 + $0x80] sm:$0xff] %v459
        %554 = vst [vmem:[%s164 + $0x88] sm:$0xff] %v464
        %555 = vst [vmem:[%s164 + $0x90] sm:$0xff] %v469
        %556 = vst [vmem:[%s164 + $0x98] sm:$0xff] %v474
        %557 = vst [vmem:[%s164 + $0xa0] sm:$0xff] %v479
        %558 = vst [vmem:[%s164 + $0xa8] sm:$0xff] %v484
        %559 = vst [vmem:[%s164 + $0xb0] sm:$0xff] %v489
        %560 = vst [vmem:[%s164 + $0xb8] sm:$0xff] %v494
        %561 = vst [vmem:[%s164 + $0xc0] sm:$0xff] %v499
        %562 = vst [vmem:[%s164 + $0xc8] sm:$0xff] %v504
        %563 = vst [vmem:[%s164 + $0xd0] sm:$0xff] %v509
        %564 = vst [vmem:[%s164 + $0xd8] sm:$0xff] %v514
        %565 = vst [vmem:[%s164 + $0xe0] sm:$0xff] %v519
        %566 = vst [vmem:[%s164 + $0xe8] sm:$0xff] %v524
        %567 = vst [vmem:[%s164 + $0xf0] sm:$0xff] %v529
        %568 = vst [vmem:[%s164 + $0xf8] sm:$0xff] %v534
        %s569 = sand.u32 %s93, 1
        %s570 = scalar_lea.sflag [#allocation3], %s569
        %s571 = sand.u32 %s93, 1
        %s572 = smul.addr %s571, 256
        %s573 = scalar_lea.vmem [#allocation2], %s572
        // Predicated region
        $region33: #{tpu_custom_call.1} parent=31 // pred_check
          %p574 = pneg %p103
        $region34: #{tpu_custom_call.1} parent=31 // pred_check_branch
          %576 = sbr.rel (%p574) target = $region36
        $region35: #{tpu_custom_call.1} parent=31 // pred_region
          %s577 = smul.u32 32, %s17
          %s579 = ssub.s32 4096, 4096
          %580 = vsyncadd %s570, %s579
          %s581 = smul.addr %s577, 128
          %s582 = scalar_lea.hbm %s3, %s581
          %s583 = sshll.u32 %s573, 4
          %s584 = int_to_ptr.vmem [resolvable:$true] %s583
          %589 = dma.vmem_to_hbm [thread:$0]  %s584, 4096, %s582, %s570, 128, 128, 8
        $region36: #{tpu_custom_call.1} parent=31 // pred_fallthru
          _
      $region32: #{tpu_custom_call.1} parent=5 // pred_fallthru
        _
      %p590 = scmp.le.s32.totalorder 2, %s12
      // Predicated region
      $region37: #{tpu_custom_call.1} parent=5 // pred_check
        %p591 = pneg %p590
      $region38: #{tpu_custom_call.1} parent=5 // pred_check_branch
        %593 = sbr.rel (%p591) target = $region40
      $region39: #{tpu_custom_call.1} parent=5 // pred_region
        %s594 = ssub.s32 %s12, 2
        // Predicated region
        $region41: #{tpu_custom_call.1} parent=39 // pred_check
          %p595 = pneg %p109
        $region42: #{tpu_custom_call.1} parent=39 // pred_check_branch
          %597 = sbr.rel (%p595) target = $region44
        $region43: #{tpu_custom_call.1} parent=39 // pred_region
          %s598 = sand.u32 %s94, 1
          %s599 = scalar_lea.sflag [#allocation3], %s598
          %s600 = sand.u32 %s94, 1
          %s601 = smul.addr %s600, 256
          %s602 = scalar_lea.vmem [#allocation2], %s601
          %603 = dma.done %s599, 4096
        $region44: #{tpu_custom_call.1} parent=39 // pred_fallthru
          _
      $region40: #{tpu_custom_call.1} parent=5 // pred_fallthru
        _
    $region6: #{tpu_custom_call.1} parent=1 // loop_footer
      %s16 = sadd.s32 1, %s12
    $region7: #{tpu_custom_call.1} parent=1 // loop_footer_branch
      %11 = sbr.rel target = $region3
    $region8: #{tpu_custom_call.1} parent=1 // loop_exit
      _
    %604 = vsyncpa [#allocation3], 1
    %s605 = scalar_lea.sflag [#allocation3], 1
    %606 = vsyncpa %s605, 1

</llo_original>
